<compile_context>
chip_gen: v7x
topology: tpu7x:2x2x1
jax: 0.10.0
libtpu: 0.0.40
codegen_flags: <defaults>
</compile_context>

<pallas_src>
import functools
import math

import jax
import jax.numpy as jnp
from jax import lax
from jax.experimental import pallas as pl
from jax.experimental.pallas import tpu as pltpu

# Below v7x's 64 MiB physical VMEM, above the 16/32 MiB scoped defaults on v5e/v6e.
_VMEM_LIMIT_BYTES = 48 * 1024 * 1024


def _fused_self_attention_kernel(x_ref, wqkv_ref, bqkv_ref, wo_ref, bo_ref, o_ref, *, dim, scale):
    """QKV projection + softmax attention + output projection, fully fused per batch element."""
    x = x_ref[0]                                                       # (S, D)

    # Single wide MXU pass: (S, D) @ (D, 3D) + bias.
    qkv = jnp.dot(x, wqkv_ref[...], preferred_element_type=jnp.float32) + bqkv_ref[...]
    # Fold the 1/sqrt(D) attention scale into q here (cheaper than scaling the (S, S) scores).
    q = qkv[:, :dim] * scale                                           # (S, D)
    k = qkv[:, dim:2 * dim]                                            # (S, D)
    v = qkv[:, 2 * dim:]                                               # (S, D)

    # Scores (S, S): contract the last dims directly -- no explicit k.T / XLU transpose.
    s = lax.dot_general(q, k, (((1,), (1,)), ((), ())),
                        preferred_element_type=jnp.float32)

    # TODO(synk): attention_mask branch of the PyTorch forward not implemented (mask=None here).
    # Numerically stable softmax over the full row (whole sequence resident in VMEM).
    m = jnp.max(s, axis=-1, keepdims=True)
    p = jnp.exp(s - m)
    l = jnp.sum(p, axis=-1, keepdims=True)

    # dropout(p=0.1) on the attention weights is the identity in eval mode.
    # Approximate reciprocal runs on the EUP (its own VLIW slot); rel. error << 1e-3.
    ctx = jnp.dot(p, v, preferred_element_type=jnp.float32) * pl.reciprocal(l, approx=True)
    out = jnp.dot(ctx, wo_ref[...], preferred_element_type=jnp.float32) + bo_ref[...]
    o_ref[0] = out.astype(o_ref.dtype)


def self_attention(x, params):
    """x: (B, S, D) float32.  params: PyTorch-layout weights (out, in) and biases (out,)."""
    B, S, D = x.shape

    # ---- wrapper-side weight prep (layout glue only) ------------------------------------------
    # nn.Linear computes y = x @ W.T + b, so pass transposed weights; fuse Q/K/V into one
    # (D, 3D) weight and (1, 3D) bias so the kernel does ONE wide MXU matmul.
    wqkv = jnp.concatenate([params["wq"].T, params["wk"].T, params["wv"].T], axis=1)   # (D, 3D)
    bqkv = jnp.concatenate([params["bq"], params["bk"], params["bv"]]).reshape(1, 3 * D)
    wo_t = params["wo"].T                                                              # (D, D)
    bo = params["bo"].reshape(1, D)

    # Rough per-batch working set (x, qkv, scores, probs, ctx, out, weights) in f32 bytes.
    vmem_working = 4 * (8 * S * D + 2 * S * S + 4 * D * D)
    assert vmem_working < _VMEM_LIMIT_BYTES, (
        "TODO(synk): fall back to a flash-tiled two-kernel path for long sequences")

    def const_spec(shape):
        # Constant blocks: same tile every grid step -> single-buffer to halve VMEM footprint.
        return pl.BlockSpec(shape, lambda b: (0,) * len(shape), pipeline_mode=pl.Buffered(1))

    out = pl.pallas_call(
        functools.partial(_fused_self_attention_kernel, dim=D, scale=1.0 / math.sqrt(D)),
        out_shape=jax.ShapeDtypeStruct((B, S, D), x.dtype),
        grid_spec=pltpu.PrefetchScalarGridSpec(
            num_scalar_prefetch=0,
            grid=(B,),
            in_specs=[pl.BlockSpec((1, S, D), lambda b: (b, 0, 0)),
                      const_spec((D, 3 * D)),
                      const_spec((1, 3 * D)),
                      const_spec((D, D)),
                      const_spec((1, D))],
            out_specs=pl.BlockSpec((1, S, D), lambda b: (b, 0, 0))),
        compiler_params=pltpu.CompilerParams(
            dimension_semantics=("parallel",),
            vmem_limit_bytes=_VMEM_LIMIT_BYTES),
    )(x, wqkv, bqkv, wo_t, bo)
    return out


def self_attention_ref(x, params):
    """Pure-JAX reference matching the PyTorch module (eval mode)."""
    D = x.shape[-1]
    q = jnp.einsum("bsd,ed->bse", x, params["wq"]) + params["bq"]
    k = jnp.einsum("bsd,ed->bse", x, params["wk"]) + params["bk"]
    v = jnp.einsum("bsd,ed->bse", x, params["wv"]) + params["bv"]
    scores = jnp.einsum("bqd,bkd->bqk", q, k) / math.sqrt(D)
    attn = jax.nn.softmax(scores, axis=-1)
    ctx = jnp.einsum("bqk,bkd->bqd", attn, v)
    return jnp.einsum("bsd,ed->bse", ctx, params["wo"]) + params["bo"]


def init_params(key, dim):
    """Deterministic parameter init (nn.Linear-like uniform bounds)."""
    ks = jax.random.split(key, 8)
    bound = 1.0 / math.sqrt(dim)
    u = lambda k, shape: jax.random.uniform(k, shape, jnp.float32, -bound, bound)
    return {
        "wq": u(ks[0], (dim, dim)), "bq": u(ks[1], (dim,)),
        "wk": u(ks[2], (dim, dim)), "bk": u(ks[3], (dim,)),
        "wv": u(ks[4], (dim, dim)), "bv": u(ks[5], (dim,)),
        "wo": u(ks[6], (dim, dim)), "bo": u(ks[7], (dim,)),
    }


if __name__ == "__main__":
    B, S, D = 2, 8, 32
    key = jax.random.PRNGKey(0)
    k_x, k_p = jax.random.split(key)
    x = jax.random.normal(k_x, (B, S, D), dtype=jnp.float32)
    params = init_params(k_p, D)

    out = jax.block_until_ready(self_attention(x, params))
    ref = self_attention_ref(x, params)

    assert out.shape == (B, S, D)
    # Tolerance covers the EUP approximate-reciprocal softmax normalization (rel err ~1e-4);
    # everything else is f32 with f32 MXU accumulation.
    assert jnp.allclose(out, ref, atol=2e-3, rtol=2e-3), (
        f"max abs err {jnp.max(jnp.abs(out - ref))}")
    print("KERNEL_OK")
</pallas_src>

<mosaic_0001>
module attributes {stable_mosaic.version = 11 : i64} {
  func.func @_fused_self_attention_kernel(%arg0: i32, %arg1: memref<1x8x32xf32, #tpu.memory_space<vmem>>, %arg2: memref<32x96xf32, #tpu.memory_space<vmem>>, %arg3: memref<1x96xf32, #tpu.memory_space<vmem>>, %arg4: memref<32x32xf32, #tpu.memory_space<vmem>>, %arg5: memref<1x32xf32, #tpu.memory_space<vmem>>, %arg6: memref<1x8x32xf32, #tpu.memory_space<vmem>>) attributes {dimension_semantics = [#tpu.dimension_semantics<parallel>], iteration_bounds = array<i64: 2>, scalar_prefetch = 0 : i64, scratch_operands = 0 : i64, tpu.core_type = #tpu.core_type<tc>, window_params = [{transform_indices = @transform_0, window_bounds = array<i64: 1, 8, 32>}, {pipeline_mode = #tpu.pipeline_mode<synchronous>, transform_indices = @transform_1, window_bounds = array<i64: 32, 96>}, {pipeline_mode = #tpu.pipeline_mode<synchronous>, transform_indices = @transform_2, window_bounds = array<i64: 1, 96>}, {pipeline_mode = #tpu.pipeline_mode<synchronous>, transform_indices = @transform_3, window_bounds = array<i64: 32, 32>}, {pipeline_mode = #tpu.pipeline_mode<synchronous>, transform_indices = @transform_4, window_bounds = array<i64: 1, 32>}, {transform_indices = @transform_5, window_bounds = array<i64: 1, 8, 32>}]} {
    %c0 = arith.constant 0 : index
    %c0_0 = arith.constant 0 : index
    %c0_1 = arith.constant 0 : index
    %0 = vector.load %arg1[%c0, %c0_0, %c0_1] : memref<1x8x32xf32, #tpu.memory_space<vmem>>, vector<1x8x32xf32>
    %1 = vector.shape_cast %0 : vector<1x8x32xf32> to vector<8x32xf32>
    %c0_2 = arith.constant 0 : index
    %c0_3 = arith.constant 0 : index
    %2 = vector.load %arg2[%c0_2, %c0_3] : memref<32x96xf32, #tpu.memory_space<vmem>>, vector<32x96xf32>
    %cst = arith.constant dense<0.000000e+00> : vector<8x96xf32>
    %3 = tpu.matmul %1, %2, %cst {dimension_numbers = #tpu.dot_dimension_numbers<[1], [0], [0], [1], [0, 0, 1, 1], [], []>} : vector<8x32xf32>, vector<32x96xf32>, vector<8x96xf32> -> vector<8x96xf32>
    %c0_4 = arith.constant 0 : index
    %c0_5 = arith.constant 0 : index
    %4 = vector.load %arg3[%c0_4, %c0_5] : memref<1x96xf32, #tpu.memory_space<vmem>>, vector<1x96xf32>
    %5 = vector.broadcast %4 : vector<1x96xf32> to vector<8x96xf32>
    %6 = arith.addf %3, %5 : vector<8x96xf32>
    %7 = vector.extract_strided_slice %6 {offsets = [0, 0], sizes = [8, 32], strides = [1, 1]} : vector<8x96xf32> to vector<8x32xf32>
    %cst_6 = arith.constant 0.176776692 : f32
    %8 = vector.broadcast %cst_6 : f32 to vector<8x32xf32>
    %9 = arith.mulf %7, %8 : vector<8x32xf32>
    %10 = vector.extract_strided_slice %6 {offsets = [0, 32], sizes = [8, 32], strides = [1, 1]} : vector<8x96xf32> to vector<8x32xf32>
    %11 = vector.extract_strided_slice %6 {offsets = [0, 64], sizes = [8, 32], strides = [1, 1]} : vector<8x96xf32> to vector<8x32xf32>
    %cst_7 = arith.constant dense<0.000000e+00> : vector<8x8xf32>
    %12 = tpu.matmul %9, %10, %cst_7 {dimension_numbers = #tpu.dot_dimension_numbers<[1], [1], [0], [0], [0, 0, 1, 0], [], []>} : vector<8x32xf32>, vector<8x32xf32>, vector<8x8xf32> -> vector<8x8xf32>
    %cst_8 = arith.constant dense<0xFF800000> : vector<8xf32>
    %13 = vector.multi_reduction <maximumf>, %12, %cst_8 [1] : vector<8x8xf32> to vector<8xf32>
    %14 = vector.shape_cast %13 : vector<8xf32> to vector<8x1xf32>
    %15 = vector.broadcast %14 : vector<8x1xf32> to vector<8x8xf32>
    %16 = arith.subf %12, %15 : vector<8x8xf32>
    %17 = math.exp %16 : vector<8x8xf32>
    %cst_9 = arith.constant dense<0.000000e+00> : vector<8xf32>
    %18 = vector.multi_reduction <add>, %17, %cst_9 [1] : vector<8x8xf32> to vector<8xf32>
    %19 = vector.shape_cast %18 : vector<8xf32> to vector<8x1xf32>
    %cst_10 = arith.constant dense<0.000000e+00> : vector<8x32xf32>
    %20 = tpu.matmul %17, %11, %cst_10 {dimension_numbers = #tpu.dot_dimension_numbers<[1], [0], [0], [1], [0, 0, 1, 1], [], []>} : vector<8x8xf32>, vector<8x32xf32>, vector<8x32xf32> -> vector<8x32xf32>
    %21 = tpu.reciprocal %19 {approx = true} : vector<8x1xf32> -> vector<8x1xf32>
    %22 = vector.broadcast %21 : vector<8x1xf32> to vector<8x32xf32>
    %23 = arith.mulf %20, %22 : vector<8x32xf32>
    %c0_11 = arith.constant 0 : index
    %c0_12 = arith.constant 0 : index
    %24 = vector.load %arg4[%c0_11, %c0_12] : memref<32x32xf32, #tpu.memory_space<vmem>>, vector<32x32xf32>
    %cst_13 = arith.constant dense<0.000000e+00> : vector<8x32xf32>
    %25 = tpu.matmul %23, %24, %cst_13 {dimension_numbers = #tpu.dot_dimension_numbers<[1], [0], [0], [1], [0, 0, 1, 1], [], []>} : vector<8x32xf32>, vector<32x32xf32>, vector<8x32xf32> -> vector<8x32xf32>
    %c0_14 = arith.constant 0 : index
    %c0_15 = arith.constant 0 : index
    %26 = vector.load %arg5[%c0_14, %c0_15] : memref<1x32xf32, #tpu.memory_space<vmem>>, vector<1x32xf32>
    %27 = vector.broadcast %26 : vector<1x32xf32> to vector<8x32xf32>
    %28 = arith.addf %25, %27 : vector<8x32xf32>
    %c0_16 = arith.constant 0 : index
    %c0_17 = arith.constant 0 : index
    %c0_18 = arith.constant 0 : index
    %29 = vector.load %arg6[%c0_16, %c0_17, %c0_18] : memref<1x8x32xf32, #tpu.memory_space<vmem>>, vector<1x8x32xf32>
    %30 = vector.shape_cast %29 : vector<1x8x32xf32> to vector<8x32xf32>
    %31 = vector.shape_cast %28 : vector<8x32xf32> to vector<1x8x32xf32>
    tpu.vector_store %arg6[%c0_16, %c0_17, %c0_18], %31 {strides = array<i32>} : memref<1x8x32xf32, #tpu.memory_space<vmem>>, vector<1x8x32xf32>,
    return
  }
  func.func @transform_0(%arg0: i32) -> (i32, i32, i32) {
    %c0_i32 = arith.constant 0 : i32
    %c0_i32_0 = arith.constant 0 : i32
    %c0_i32_1 = arith.constant 0 : i32
    return %arg0, %c0_i32, %c0_i32_0 : i32, i32, i32
  }
  func.func @transform_1(%arg0: i32) -> (i32, i32) {
    %c0_i32 = arith.constant 0 : i32
    %c0_i32_0 = arith.constant 0 : i32
    %c0_i32_1 = arith.constant 0 : i32
    return %c0_i32, %c0_i32_0 : i32, i32
  }
  func.func @transform_2(%arg0: i32) -> (i32, i32) {
    %c0_i32 = arith.constant 0 : i32
    %c0_i32_0 = arith.constant 0 : i32
    %c0_i32_1 = arith.constant 0 : i32
    return %c0_i32, %c0_i32_0 : i32, i32
  }
  func.func @transform_3(%arg0: i32) -> (i32, i32) {
    %c0_i32 = arith.constant 0 : i32
    %c0_i32_0 = arith.constant 0 : i32
    %c0_i32_1 = arith.constant 0 : i32
    return %c0_i32, %c0_i32_0 : i32, i32
  }
  func.func @transform_4(%arg0: i32) -> (i32, i32) {
    %c0_i32 = arith.constant 0 : i32
    %c0_i32_0 = arith.constant 0 : i32
    %c0_i32_1 = arith.constant 0 : i32
    return %c0_i32, %c0_i32_0 : i32, i32
  }
  func.func @transform_5(%arg0: i32) -> (i32, i32, i32) {
    %c0_i32 = arith.constant 0 : i32
    %c0_i32_0 = arith.constant 0 : i32
    %c0_i32_1 = arith.constant 0 : i32
    return %arg0, %c0_i32, %c0_i32_0 : i32, i32, i32
  }
}

</mosaic_0001>

<llo_original>
// kernel: tpu_custom_call.1
$region0: #{tpu_custom_call.1}
  #allocation0 [shape = 'u32[]', space=smem, size = 0x4, offset = 0x4, fixed_abs, tag = 'smem constant byte address 0x4 - core index']
  #allocation1 [shape = 'u32[144,128]{1,0:T(1,128)}', space=vmem, size = 0x12000, scoped, tag = 'internal scratch']
  %s0 = inlined_call_operand.hbm [shape: f32[2,8,32], index: 0, kind: input, shape index: {}]
  %s1 = inlined_call_operand.hbm [shape: f32[32,96], index: 1, kind: input, shape index: {}]
  %s2 = inlined_call_operand.vmem [shape: f32[1,96], index: 2, kind: input, shape index: {}]
  %s3 = inlined_call_operand.hbm [shape: f32[32,32], index: 3, kind: input, shape index: {}]
  %s4 = inlined_call_operand.vmem [shape: f32[1,32], index: 4, kind: input, shape index: {}]
  %s5 = inlined_call_operand.hbm [shape: f32[2,8,32], index: 5, kind: output, shape index: {}]
  %s6 = sld [smem:[#allocation0]]
  $region65: #{tpu_custom_call.1} parent=0
    _
  %s8 = ssub.s32 1, %s6
  %s9 = scalar_select 0, %s8, %s6
  $region1: #{tpu_custom_call.1} parent=0
    #allocation2 [shape = 'u8[8192]{0}', space=vmem, size = 0x2000, scoped, tag = 'input window, operand 0']
    #allocation3 [shape = 's32[2]{0}', space=sflag, size = 0x8, scoped, tag = 'scoped memory for tpu_custom_call.1']
    #allocation4 [shape = 's32[2]{0}', space=sflag, size = 0x8, scoped, tag = 'scoped memory for tpu_custom_call.1']
    #allocation5 [shape = 'u8[16384]{0}', space=vmem, size = 0x4000, scoped, tag = 'input window, operand 1, single buffered']
    #allocation6 [shape = 's32[1]{0}', space=sflag, size = 0x4, scoped, tag = 'scoped memory for tpu_custom_call.1']
    #allocation7 [shape = 'u8[16384]{0}', space=vmem, size = 0x4000, scoped, tag = 'input window, operand 3, single buffered']
    #allocation8 [shape = 'u8[8192]{0}', space=vmem, size = 0x2000, scoped, tag = 'output window, operand 0']
    %10 = vsyncpa [#allocation3], 0
    %s11 = scalar_lea.sflag [#allocation3], 1
    %12 = vsyncpa %s11, 0
    %13 = vsyncpa [#allocation6], 0
    %14 = vsyncpa [#allocation4], 0
    %s15 = scalar_lea.sflag [#allocation4], 1
    %16 = vsyncpa %s15, 0
    loop: start=0, step=1, limit=4
    $region2: #{tpu_custom_call.1} parent=1 // loop_pre_header
      _
    $region3: #{tpu_custom_call.1} parent=1 // loop_header
      %s18 = sphi 0, %s22
      %p19 = scmp.ge.s32.totalorder %s18, 4
      %s28 = sphi 0, %s30
      %s31 = sphi 0, %s28
      %s32 = sphi 0, %s31
      %s48 = sphi 0, %s32
      %s52 = sphi 0, %s52
      %s54 = sphi 0, %s52
      %s55 = sphi 0, %s54
      %s69 = sphi 0, %s55
      %s73 = sphi 0, %s73
      %s75 = sphi 0, %s73
      %s76 = sphi 0, %s75
      %s90 = sphi 0, %s76
      %s94 = sphi 0, %s94
      %s96 = sphi 0, %s94
      %s97 = sphi 0, %s96
      %s111 = sphi 0, %s97
      %s115 = sphi 0, %s115
      %s117 = sphi 0, %s115
      %s118 = sphi 0, %s117
      %s132 = sphi 0, %s118
      %s138 = sphi 0, %s140
      %s141 = sphi 0, %s138
      %s142 = sphi 0, %s141
      %s158 = sphi 0, %s142
    $region4: #{tpu_custom_call.1} parent=1 // loop_header_branch
      %21 = sbr.rel (%p19) target = $region8
    $region5: #{tpu_custom_call.1} parent=1 // loop_body
      %s23 = ssub.s32 %s18, 1
      %s24 = ssub.s32 %s18, 2
      %s25 = sadd.s32 %s18, 1
      %s26 = ssub.s32 %s18, %s25
      %p27 = scmp.eq.s32.totalorder %s26, 0
      %s29 = sadd.s32 %s28, 1
      %s30 = scalar_select %p27, %s28, %s29
      %p33 = pneg %p27
      %p34 = scmp.eq.s32.totalorder %s18, 1
      %p35 = por %p33, %p34
      %p36 = scmp.ne.s32.totalorder %s28, %s31
      %p37 = scmp.eq.s32.totalorder %s18, 0
      %p38 = por %p36, %p37
      %p39 = scmp.ne.s32.totalorder %s28, %s31
      %p40 = scmp.eq.s32.totalorder %s23, 1
      %p41 = por %p39, %p40
      %p42 = scmp.ne.s32.totalorder %s31, %s32
      %p43 = scmp.eq.s32.totalorder %s23, 0
      %p44 = por %p42, %p43
      %p45 = scmp.ne.s32.totalorder %s31, %s32
      %p46 = scmp.eq.s32.totalorder %s24, 1
      %p47 = por %p45, %p46
      %p49 = scmp.ne.s32.totalorder %s32, %s48
      %p50 = scmp.eq.s32.totalorder %s24, 0
      %p51 = por %p49, %p50
      %s53 = sadd.s32 %s52, 1
      %p56 = scmp.eq.s32.totalorder %s18, 1
      %p57 = scmp.ne.s32.totalorder %s52, %s54
      %p58 = scmp.eq.s32.totalorder %s18, 0
      %p59 = por %p57, %p58
      %p60 = scmp.ne.s32.totalorder %s52, %s54
      %p61 = scmp.eq.s32.totalorder %s23, 1
      %p62 = por %p60, %p61
      %p63 = scmp.ne.s32.totalorder %s54, %s55
      %p64 = scmp.eq.s32.totalorder %s23, 0
      %p65 = por %p63, %p64
      %p66 = scmp.ne.s32.totalorder %s54, %s55
      %p67 = scmp.eq.s32.totalorder %s24, 1
      %p68 = por %p66, %p67
      %p70 = scmp.ne.s32.totalorder %s55, %s69
      %p71 = scmp.eq.s32.totalorder %s24, 0
      %p72 = por %p70, %p71
      %s74 = sadd.s32 %s73, 1
      %p77 = scmp.eq.s32.totalorder %s18, 1
      %p78 = scmp.ne.s32.totalorder %s73, %s75
      %p79 = scmp.eq.s32.totalorder %s18, 0
      %p80 = por %p78, %p79
      %p81 = scmp.ne.s32.totalorder %s73, %s75
      %p82 = scmp.eq.s32.totalorder %s23, 1
      %p83 = por %p81, %p82
      %p84 = scmp.ne.s32.totalorder %s75, %s76
      %p85 = scmp.eq.s32.totalorder %s23, 0
      %p86 = por %p84, %p85
      %p87 = scmp.ne.s32.totalorder %s75, %s76
      %p88 = scmp.eq.s32.totalorder %s24, 1
      %p89 = por %p87, %p88
      %p91 = scmp.ne.s32.totalorder %s76, %s90
      %p92 = scmp.eq.s32.totalorder %s24, 0
      %p93 = por %p91, %p92
      %s95 = sadd.s32 %s94, 1
      %p98 = scmp.eq.s32.totalorder %s18, 1
      %p99 = scmp.ne.s32.totalorder %s94, %s96
      %p100 = scmp.eq.s32.totalorder %s18, 0
      %p101 = por %p99, %p100
      %p102 = scmp.ne.s32.totalorder %s94, %s96
      %p103 = scmp.eq.s32.totalorder %s23, 1
      %p104 = por %p102, %p103
      %p105 = scmp.ne.s32.totalorder %s96, %s97
      %p106 = scmp.eq.s32.totalorder %s23, 0
      %p107 = por %p105, %p106
      %p108 = scmp.ne.s32.totalorder %s96, %s97
      %p109 = scmp.eq.s32.totalorder %s24, 1
      %p110 = por %p108, %p109
      %p112 = scmp.ne.s32.totalorder %s97, %s111
      %p113 = scmp.eq.s32.totalorder %s24, 0
      %p114 = por %p112, %p113
      %s116 = sadd.s32 %s115, 1
      %p119 = scmp.eq.s32.totalorder %s18, 1
      %p120 = scmp.ne.s32.totalorder %s115, %s117
      %p121 = scmp.eq.s32.totalorder %s18, 0
      %p122 = por %p120, %p121
      %p123 = scmp.ne.s32.totalorder %s115, %s117
      %p124 = scmp.eq.s32.totalorder %s23, 1
      %p125 = por %p123, %p124
      %p126 = scmp.ne.s32.totalorder %s117, %s118
      %p127 = scmp.eq.s32.totalorder %s23, 0
      %p128 = por %p126, %p127
      %p129 = scmp.ne.s32.totalorder %s117, %s118
      %p130 = scmp.eq.s32.totalorder %s24, 1
      %p131 = por %p129, %p130
      %p133 = scmp.ne.s32.totalorder %s118, %s132
      %p134 = scmp.eq.s32.totalorder %s24, 0
      %p135 = por %p133, %p134
      %s136 = ssub.s32 %s18, %s25
      %p137 = scmp.eq.s32.totalorder %s136, 0
      %s139 = sadd.s32 %s138, 1
      %s140 = scalar_select %p137, %s138, %s139
      %p143 = pneg %p137
      %p144 = scmp.eq.s32.totalorder %s18, 1
      %p145 = por %p143, %p144
      %p146 = scmp.ne.s32.totalorder %s138, %s141
      %p147 = scmp.eq.s32.totalorder %s18, 0
      %p148 = por %p146, %p147
      %p149 = scmp.ne.s32.totalorder %s138, %s141
      %p150 = scmp.eq.s32.totalorder %s23, 1
      %p151 = por %p149, %p150
      %p152 = scmp.ne.s32.totalorder %s141, %s142
      %p153 = scmp.eq.s32.totalorder %s23, 0
      %p154 = por %p152, %p153
      %p155 = scmp.ne.s32.totalorder %s141, %s142
      %p156 = scmp.eq.s32.totalorder %s24, 1
      %p157 = por %p155, %p156
      %p159 = scmp.ne.s32.totalorder %s142, %s158
      %p160 = scmp.eq.s32.totalorder %s24, 0
      %p161 = por %p159, %p160
      %p162 = scmp.le.s32.totalorder 1, %s18
      %p163 = scmp.lt.s32.totalorder %s18, 3
      %p164 = pnand %p162, %p163
      %p165 = pneg %p164
      // Predicated region
      $region9: #{tpu_custom_call.1} parent=5 // pred_check
        _
      $region10: #{tpu_custom_call.1} parent=5 // pred_check_branch
        %167 = sbr.rel (%p164) target = $region12
      $region11: #{tpu_custom_call.1} parent=5 // pred_region
        %s168 = ssub.s32 %s18, 1
        // Predicated region
        $region13: #{tpu_custom_call.1} parent=11 // pred_check
          %p169 = pneg %p65
        $region14: #{tpu_custom_call.1} parent=11 // pred_check_branch
          %171 = sbr.rel (%p169) target = $region16
        $region15: #{tpu_custom_call.1} parent=11 // pred_region
          %s173 = ssub.s32 512, 512
          %174 = vsyncadd [#allocation6], %s173
          %s175 = sshll.u32 [#allocation5], 4
          %s176 = int_to_ptr.vmem [resolvable:$true] %s175
          %181 = dma.hbm_to_vmem [thread:$0]  %s1, 512, %s176, [#allocation6], 128, 128, 8
        $region16: #{tpu_custom_call.1} parent=11 // pred_fallthru
          _
        // Predicated region
        $region17: #{tpu_custom_call.1} parent=11 // pred_check
          %p182 = pneg %p86
        $region18: #{tpu_custom_call.1} parent=11 // pred_check_branch
          %184 = sbr.rel (%p182) target = $region20
        $region19: #{tpu_custom_call.1} parent=11 // pred_region
          _
        $region20: #{tpu_custom_call.1} parent=11 // pred_fallthru
          _
        // Predicated region
        $region21: #{tpu_custom_call.1} parent=11 // pred_check
          %p185 = pneg %p107
        $region22: #{tpu_custom_call.1} parent=11 // pred_check_branch
          %187 = sbr.rel (%p185) target = $region24
        $region23: #{tpu_custom_call.1} parent=11 // pred_region
          %s189 = ssub.s32 512, 512
          %190 = vsyncadd [#allocation6], %s189
          %s191 = sshll.u32 [#allocation7], 4
          %s192 = int_to_ptr.vmem [resolvable:$true] %s191
          %197 = dma.hbm_to_vmem [thread:$0]  %s3, 512, %s192, [#allocation6], 128, 128, 8
        $region24: #{tpu_custom_call.1} parent=11 // pred_fallthru
          _
        // Predicated region
        $region25: #{tpu_custom_call.1} parent=11 // pred_check
          %p198 = pneg %p128
        $region26: #{tpu_custom_call.1} parent=11 // pred_check_branch
          %200 = sbr.rel (%p198) target = $region28
        $region27: #{tpu_custom_call.1} parent=11 // pred_region
          _
        $region28: #{tpu_custom_call.1} parent=11 // pred_fallthru
          _
      $region12: #{tpu_custom_call.1} parent=5 // pred_fallthru
        _
      %p201 = scmp.lt.s32.totalorder %s18, 2
      // Predicated region
      $region29: #{tpu_custom_call.1} parent=5 // pred_check
        %p202 = pneg %p201
      $region30: #{tpu_custom_call.1} parent=5 // pred_check_branch
        %204 = sbr.rel (%p202) target = $region32
      $region31: #{tpu_custom_call.1} parent=5 // pred_region
        // Predicated region
        $region33: #{tpu_custom_call.1} parent=31 // pred_check
          %p205 = pneg %p38
        $region34: #{tpu_custom_call.1} parent=31 // pred_check_branch
          %207 = sbr.rel (%p205) target = $region36
        $region35: #{tpu_custom_call.1} parent=31 // pred_region
          %s208 = sand.u32 %s28, 1
          %s209 = scalar_lea.sflag [#allocation3], %s208
          %s210 = sand.u32 %s28, 1
          %s211 = smul.addr %s210, 8
          %s212 = scalar_lea.vmem [#allocation2], %s211
          %s214 = ssub.s32 128, 128
          %215 = vsyncadd %s209, %s214
          %s216 = smul.addr %s18, 128
          %s217 = scalar_lea.hbm %s0, %s216
          %s219 = sshll.u32 %s212, 4
          %s220 = int_to_ptr.vmem [resolvable:$true] %s219
          %222 = dma.hbm_to_vmem [thread:$0]  %s217, 128, %s220, %s209
        $region36: #{tpu_custom_call.1} parent=31 // pred_fallthru
          _
      $region32: #{tpu_custom_call.1} parent=5 // pred_fallthru
        _
      %p223 = scmp.le.s32.totalorder 1, %s18
      %p224 = scmp.lt.s32.totalorder %s18, 3
      %p225 = pnand %p223, %p224
      %p226 = pneg %p225
      // Predicated region
      $region37: #{tpu_custom_call.1} parent=5 // pred_check
        _
      $region38: #{tpu_custom_call.1} parent=5 // pred_check_branch
        %228 = sbr.rel (%p225) target = $region40
      $region39: #{tpu_custom_call.1} parent=5 // pred_region
        %s229 = ssub.s32 %s18, 1
        %s230 = sand.u32 %s31, 1
        %s231 = scalar_lea.sflag [#allocation3], %s230
        %s232 = sand.u32 %s31, 1
        %s233 = smul.addr %s232, 8
        %s234 = scalar_lea.vmem [#allocation2], %s233
        // Predicated region
        $region41: #{tpu_custom_call.1} parent=39 // pred_check
          %p235 = pneg %p44
        $region42: #{tpu_custom_call.1} parent=39 // pred_check_branch
          %237 = sbr.rel (%p235) target = $region44
        $region43: #{tpu_custom_call.1} parent=39 // pred_region
          %238 = dma.done %s231, 128
        $region44: #{tpu_custom_call.1} parent=39 // pred_fallthru
          _
        // Predicated region
        $region45: #{tpu_custom_call.1} parent=39 // pred_check
          %p239 = pneg %p65
        $region46: #{tpu_custom_call.1} parent=39 // pred_check_branch
          %241 = sbr.rel (%p239) target = $region48
        $region47: #{tpu_custom_call.1} parent=39 // pred_region
          %242 = dma.done [#allocation6], 512
        $region48: #{tpu_custom_call.1} parent=39 // pred_fallthru
          _
        // Predicated region
        $region49: #{tpu_custom_call.1} parent=39 // pred_check
          %p243 = pneg %p107
        $region50: #{tpu_custom_call.1} parent=39 // pred_check_branch
          %245 = sbr.rel (%p243) target = $region52
        $region51: #{tpu_custom_call.1} parent=39 // pred_region
          %246 = dma.done [#allocation6], 512
        $region52: #{tpu_custom_call.1} parent=39 // pred_fallthru
          _
        %s247 = sand.u32 %s31, 1
        %s248 = scalar_lea.sflag [#allocation3], %s247
        %s249 = sand.u32 %s31, 1
        %s250 = smul.addr %s249, 8
        %s251 = scalar_lea.vmem [#allocation2], %s250
        %p252 = pneg %p44
        %p253 = pneg %p41
        %p254 = pneg %p65
        %p255 = pneg %p62
        %p256 = pneg %p86
        %p257 = pneg %p83
        %p258 = pneg %p107
        %p259 = pneg %p104
        %p260 = pneg %p128
        %p261 = pneg %p125
        %p262 = pneg %p154
        %p263 = pneg %p151
        %s264 = sand.u32 %s141, 1
        %s265 = scalar_lea.sflag [#allocation4], %s264
        %s266 = sand.u32 %s141, 1
        %s267 = smul.addr %s266, 8
        %s268 = scalar_lea.vmem [#allocation8], %s267
        %v269 = vld [vmem:[%s234] sm:$0xff]
        %v270 = vld [vmem:[#allocation5] sm:$0xff]
        %v271 = vld [vmem:[#allocation5 + $0x8] sm:$0xff]
        %v272 = vld [vmem:[#allocation5 + $0x10] sm:$0xff]
        %v273 = vld [vmem:[#allocation5 + $0x18] sm:$0xff]
        %v274 = vld [vmem:[%s2] sm:$0x1]
        %v276 = vlaneseq
        %v277 = vshrl.u32 %v276, 7
        %v278 = vsub.s32 0, %v277
        %v279 = vrot.slane %v274, %v278
        %vm281 = vcmask 261120
        %v283 = vsel %vm281, %v269, 0
        %285 = vmatprep.subr.mxu0 0.0
        %286 = vmatpush1.msra.mxu0 %v270
        %287 = vmatprep.subr.mxu0 0.0
        %288 = vmatpush1.msra.mxu0 %v271
        %289 = vmatprep.subr.mxu0 0.0
        %290 = vmatpush1.msra.mxu0 %v272
        %291 = vmatprep.subr.mxu0 0.0
        %292 = vmatpush1.msra.mxu0 %v273
        %293 = vmatprep.subr.mxu0 0.0
        %294 = vmatpush1.msra.mxu0 0.0
        %295 = vmatprep.subr.mxu0 0.0
        %296 = vmatpush1.msra.mxu0 0.0
        %297 = vmatprep.subr.mxu0 0.0
        %298 = vmatpush1.msra.mxu0 0.0
        %299 = vmatprep.subr.mxu0 0.0
        %300 = vmatpush1.msra.mxu0 0.0
        %301 = vmatprep.subr.mxu0 0.0
        %302 = vmatpush1.msra.mxu0 0.0
        %303 = vmatprep.subr.mxu0 0.0
        %304 = vmatpush1.msra.mxu0 0.0
        %305 = vmatprep.subr.mxu0 0.0
        %306 = vmatpush1.msra.mxu0 0.0
        %307 = vmatprep.subr.mxu0 0.0
        %308 = vmatpush1.msra.mxu0 0.0
        %309 = vmatprep.subr.mxu0 0.0
        %310 = vmatpush1.msra.mxu0 0.0
        %311 = vmatprep.subr.mxu0 0.0
        %312 = vmatpush1.msra.mxu0 0.0
        %313 = vmatprep.subr.mxu0 0.0
        %314 = vmatpush1.msra.mxu0 0.0
        %315 = vmatprep.subr.mxu0 0.0
        %316 = vmatpush1.msra.mxu0 0.0
        %317 = vmatprep.subr.mxu0 0.0
        %318 = vmatpush1.msra.mxu0 0.0
        %319 = vmatprep.subr.mxu0 0.0
        %320 = vmatpush1.msra.mxu0 0.0
        %321 = vmatprep.subr.mxu0 0.0
        %322 = vmatpush1.msra.mxu0 0.0
        %323 = vmatprep.subr.mxu0 0.0
        %324 = vmatpush1.msra.mxu0 0.0
        %325 = vmatprep.subr.mxu0 0.0
        %326 = vmatpush1.msra.mxu0 0.0
        %327 = vmatprep.subr.mxu0 0.0
        %328 = vmatpush1.msra.mxu0 0.0
        %329 = vmatprep.subr.mxu0 0.0
        %330 = vmatpush1.msra.mxu0 0.0
        %331 = vmatprep.subr.mxu0 0.0
        %332 = vmatpush1.msra.mxu0 0.0
        %333 = vmatprep.subr.mxu0 0.0
        %334 = vmatpush1.msra.mxu0 0.0
        %335 = vmatprep.subr.mxu0 0.0
        %336 = vmatpush1.msra.mxu0 0.0
        %337 = vmatprep.subr.mxu0 0.0
        %338 = vmatpush1.msra.mxu0 0.0
        %339 = vmatprep.subr.mxu0 0.0
        %340 = vmatpush1.msra.mxu0 0.0
        %341 = vmatprep.subr.mxu0 0.0
        %342 = vmatpush1.msra.mxu0 0.0
        %343 = vmatprep.subr.mxu0 0.0
        %344 = vmatpush1.msra.mxu0 0.0
        %345 = vmatprep.subr.mxu0 0.0
        %346 = vmatpush1.msra.mxu0 0.0
        %347 = vmatprep.subr.mxu0 0.0
        %348 = vmatpush1.msra.mxu0 0.0
        %349 = vmatprep.mubr.f32.mxu0 0.0
        %350 = vmatmul.mubr.f32.gmra.mrb[0].mxu0 %v283
        %v351 = vpop.f32.mrb[0].mxu0
        %v352 = vadd.f32 %v279, %v351
        %v353 = vpop.f32.mrb[0].mxu0
        %354 = vdwg.mxu0
        %v355 = vmul.f32 %v352, 0.17677669
        %357 = vrot.lane.b32.xlu0 %v352, 96
        %v358 = vpop.permute.xlu0 %357
        %v360 = vsel %vm281, %v355, 0
        %v362 = vsel %vm281, %v358, 0
        %364 = vmatprep.subr.mxu0 0.0
        %365 = vmatpush1.xpose.msra.mxu0 %v362
        %366 = vmatprep.subr.mxu0 0.0
        %367 = vmatpush1.xpose.msra.mxu0 0.0
        %368 = vmatprep.subr.mxu0 0.0
        %369 = vmatpush1.xpose.msra.mxu0 0.0
        %370 = vmatprep.subr.mxu0 0.0
        %371 = vmatpush1.xpose.msra.mxu0 0.0
        %372 = vmatprep.subr.mxu0 0.0
        %373 = vmatpush1.xpose.msra.mxu0 0.0
        %374 = vmatprep.subr.mxu0 0.0
        %375 = vmatpush1.xpose.msra.mxu0 0.0
        %376 = vmatprep.subr.mxu0 0.0
        %377 = vmatpush1.xpose.msra.mxu0 0.0
        %378 = vmatprep.subr.mxu0 0.0
        %379 = vmatpush1.xpose.msra.mxu0 0.0
        %380 = vmatprep.subr.mxu0 0.0
        %381 = vmatpush1.xpose.msra.mxu0 0.0
        %382 = vmatprep.subr.mxu0 0.0
        %383 = vmatpush1.xpose.msra.mxu0 0.0
        %384 = vmatprep.subr.mxu0 0.0
        %385 = vmatpush1.xpose.msra.mxu0 0.0
        %386 = vmatprep.subr.mxu0 0.0
        %387 = vmatpush1.xpose.msra.mxu0 0.0
        %388 = vmatprep.subr.mxu0 0.0
        %389 = vmatpush1.xpose.msra.mxu0 0.0
        %390 = vmatprep.subr.mxu0 0.0
        %391 = vmatpush1.xpose.msra.mxu0 0.0
        %392 = vmatprep.subr.mxu0 0.0
        %393 = vmatpush1.xpose.msra.mxu0 0.0
        %394 = vmatprep.subr.mxu0 0.0
        %395 = vmatpush1.xpose.msra.mxu0 0.0
        %396 = vmatprep.subr.mxu0 0.0
        %397 = vmatpush1.xpose.msra.mxu0 0.0
        %398 = vmatprep.subr.mxu0 0.0
        %399 = vmatpush1.xpose.msra.mxu0 0.0
        %400 = vmatprep.subr.mxu0 0.0
        %401 = vmatpush1.xpose.msra.mxu0 0.0
        %402 = vmatprep.subr.mxu0 0.0
        %403 = vmatpush1.xpose.msra.mxu0 0.0
        %404 = vmatprep.subr.mxu0 0.0
        %405 = vmatpush1.xpose.msra.mxu0 0.0
        %406 = vmatprep.subr.mxu0 0.0
        %407 = vmatpush1.xpose.msra.mxu0 0.0
        %408 = vmatprep.subr.mxu0 0.0
        %409 = vmatpush1.xpose.msra.mxu0 0.0
        %410 = vmatprep.subr.mxu0 0.0
        %411 = vmatpush1.xpose.msra.mxu0 0.0
        %412 = vmatprep.subr.mxu0 0.0
        %413 = vmatpush1.xpose.msra.mxu0 0.0
        %414 = vmatprep.subr.mxu0 0.0
        %415 = vmatpush1.xpose.msra.mxu0 0.0
        %416 = vmatprep.subr.mxu0 0.0
        %417 = vmatpush1.xpose.msra.mxu0 0.0
        %418 = vmatprep.subr.mxu0 0.0
        %419 = vmatpush1.xpose.msra.mxu0 0.0
        %420 = vmatprep.subr.mxu0 0.0
        %421 = vmatpush1.xpose.msra.mxu0 0.0
        %422 = vmatprep.subr.mxu0 0.0
        %423 = vmatpush1.xpose.msra.mxu0 0.0
        %424 = vmatprep.subr.mxu0 0.0
        %425 = vmatpush1.xpose.msra.mxu0 0.0
        %426 = vmatprep.subr.mxu0 0.0
        %427 = vmatpush1.xpose.msra.mxu0 0.0
        %428 = vmatprep.mubr.f32.mxu0 0.0
        %429 = vmatmul.mubr.f32.gmra.mrb[0].mxu0 %v360
        %v430 = vpop.f32.mrb[0].mxu0
        %v431 = vadd.f32 0.0, %v430
        %v432 = vpop.f32.mrb[0].mxu0
        %433 = vdwg.mxu0
        %vm434 = vcmask 64512
        %v435 = vsel %vm434, %v431, -inf
        %436 = vmax.xlane.f32.xlu0 %v435
        %v437 = vpop.xlane.xlu0 %436
        %v438 = vsub.f32 %v431, %v437
        %v439 = vmul.f32 %v438, 1.442695
        %v440 = vpow.pop %v439
        %v441 = vsel %vm434, %v440, 0.0
        %442 = vadd.xlane.f32.xlu0 %v441
        %v443 = vpop.xlane.xlu0 %442
        %444 = vrot.lane.b32.xlu0 %v352, 64
        %v445 = vpop.permute.xlu0 %444
        %v448 = vsel %vm434, %v440, 0
        %450 = vmatprep.subr.mxu0 0.0
        %451 = vmatpush1.msra.mxu0 %v445
        %452 = vmatprep.subr.mxu0 0.0
        %453 = vmatpush1.msra.mxu0 0.0
        %454 = vmatprep.subr.mxu0 0.0
        %455 = vmatpush1.msra.mxu0 0.0
        %456 = vmatprep.subr.mxu0 0.0
        %457 = vmatpush1.msra.mxu0 0.0
        %458 = vmatprep.subr.mxu0 0.0
        %459 = vmatpush1.msra.mxu0 0.0
        %460 = vmatprep.subr.mxu0 0.0
        %461 = vmatpush1.msra.mxu0 0.0
        %462 = vmatprep.subr.mxu0 0.0
        %463 = vmatpush1.msra.mxu0 0.0
        %464 = vmatprep.subr.mxu0 0.0
        %465 = vmatpush1.msra.mxu0 0.0
        %466 = vmatprep.subr.mxu0 0.0
        %467 = vmatpush1.msra.mxu0 0.0
        %468 = vmatprep.subr.mxu0 0.0
        %469 = vmatpush1.msra.mxu0 0.0
        %470 = vmatprep.subr.mxu0 0.0
        %471 = vmatpush1.msra.mxu0 0.0
        %472 = vmatprep.subr.mxu0 0.0
        %473 = vmatpush1.msra.mxu0 0.0
        %474 = vmatprep.subr.mxu0 0.0
        %475 = vmatpush1.msra.mxu0 0.0
        %476 = vmatprep.subr.mxu0 0.0
        %477 = vmatpush1.msra.mxu0 0.0
        %478 = vmatprep.subr.mxu0 0.0
        %479 = vmatpush1.msra.mxu0 0.0
        %480 = vmatprep.subr.mxu0 0.0
        %481 = vmatpush1.msra.mxu0 0.0
        %482 = vmatprep.subr.mxu0 0.0
        %483 = vmatpush1.msra.mxu0 0.0
        %484 = vmatprep.subr.mxu0 0.0
        %485 = vmatpush1.msra.mxu0 0.0
        %486 = vmatprep.subr.mxu0 0.0
        %487 = vmatpush1.msra.mxu0 0.0
        %488 = vmatprep.subr.mxu0 0.0
        %489 = vmatpush1.msra.mxu0 0.0
        %490 = vmatprep.subr.mxu0 0.0
        %491 = vmatpush1.msra.mxu0 0.0
        %492 = vmatprep.subr.mxu0 0.0
        %493 = vmatpush1.msra.mxu0 0.0
        %494 = vmatprep.subr.mxu0 0.0
        %495 = vmatpush1.msra.mxu0 0.0
        %496 = vmatprep.subr.mxu0 0.0
        %497 = vmatpush1.msra.mxu0 0.0
        %498 = vmatprep.subr.mxu0 0.0
        %499 = vmatpush1.msra.mxu0 0.0
        %500 = vmatprep.subr.mxu0 0.0
        %501 = vmatpush1.msra.mxu0 0.0
        %502 = vmatprep.subr.mxu0 0.0
        %503 = vmatpush1.msra.mxu0 0.0
        %504 = vmatprep.subr.mxu0 0.0
        %505 = vmatpush1.msra.mxu0 0.0
        %506 = vmatprep.subr.mxu0 0.0
        %507 = vmatpush1.msra.mxu0 0.0
        %508 = vmatprep.subr.mxu0 0.0
        %509 = vmatpush1.msra.mxu0 0.0
        %510 = vmatprep.subr.mxu0 0.0
        %511 = vmatpush1.msra.mxu0 0.0
        %512 = vmatprep.subr.mxu0 0.0
        %513 = vmatpush1.msra.mxu0 0.0
        %514 = vmatprep.mubr.f32.mxu0 0.0
        %515 = vmatmul.mubr.f32.gmra.mrb[0].mxu0 %v448
        %v516 = vpop.f32.mrb[0].mxu0
        %v517 = vadd.f32 0.0, %v516
        %v518 = vpop.f32.mrb[0].mxu0
        %519 = vdwg.mxu0
        %v520 = vrcp.pop %v443
        %v521 = vmul.f32 %v517, %v520
        %v522 = vld [vmem:[#allocation7] sm:$0xff]
        %v523 = vld [vmem:[#allocation7 + $0x8] sm:$0xff]
        %v524 = vld [vmem:[#allocation7 + $0x10] sm:$0xff]
        %v525 = vld [vmem:[#allocation7 + $0x18] sm:$0xff]
        %v526 = vld [vmem:[%s4] sm:$0x1]
        %v528 = vlaneseq
        %v529 = vshrl.u32 %v528, 7
        %v530 = vsub.s32 0, %v529
        %v531 = vrot.slane %v526, %v530
        %v534 = vsel %vm281, %v521, 0
        %536 = vmatprep.subr.mxu0 0.0
        %537 = vmatpush1.msra.mxu0 %v522
        %538 = vmatprep.subr.mxu0 0.0
        %539 = vmatpush1.msra.mxu0 %v523
        %540 = vmatprep.subr.mxu0 0.0
        %541 = vmatpush1.msra.mxu0 %v524
        %542 = vmatprep.subr.mxu0 0.0
        %543 = vmatpush1.msra.mxu0 %v525
        %544 = vmatprep.subr.mxu0 0.0
        %545 = vmatpush1.msra.mxu0 0.0
        %546 = vmatprep.subr.mxu0 0.0
        %547 = vmatpush1.msra.mxu0 0.0
        %548 = vmatprep.subr.mxu0 0.0
        %549 = vmatpush1.msra.mxu0 0.0
        %550 = vmatprep.subr.mxu0 0.0
        %551 = vmatpush1.msra.mxu0 0.0
        %552 = vmatprep.subr.mxu0 0.0
        %553 = vmatpush1.msra.mxu0 0.0
        %554 = vmatprep.subr.mxu0 0.0
        %555 = vmatpush1.msra.mxu0 0.0
        %556 = vmatprep.subr.mxu0 0.0
        %557 = vmatpush1.msra.mxu0 0.0
        %558 = vmatprep.subr.mxu0 0.0
        %559 = vmatpush1.msra.mxu0 0.0
        %560 = vmatprep.subr.mxu0 0.0
        %561 = vmatpush1.msra.mxu0 0.0
        %562 = vmatprep.subr.mxu0 0.0
        %563 = vmatpush1.msra.mxu0 0.0
        %564 = vmatprep.subr.mxu0 0.0
        %565 = vmatpush1.msra.mxu0 0.0
        %566 = vmatprep.subr.mxu0 0.0
        %567 = vmatpush1.msra.mxu0 0.0
        %568 = vmatprep.subr.mxu0 0.0
        %569 = vmatpush1.msra.mxu0 0.0
        %570 = vmatprep.subr.mxu0 0.0
        %571 = vmatpush1.msra.mxu0 0.0
        %572 = vmatprep.subr.mxu0 0.0
        %573 = vmatpush1.msra.mxu0 0.0
        %574 = vmatprep.subr.mxu0 0.0
        %575 = vmatpush1.msra.mxu0 0.0
        %576 = vmatprep.subr.mxu0 0.0
        %577 = vmatpush1.msra.mxu0 0.0
        %578 = vmatprep.subr.mxu0 0.0
        %579 = vmatpush1.msra.mxu0 0.0
        %580 = vmatprep.subr.mxu0 0.0
        %581 = vmatpush1.msra.mxu0 0.0
        %582 = vmatprep.subr.mxu0 0.0
        %583 = vmatpush1.msra.mxu0 0.0
        %584 = vmatprep.subr.mxu0 0.0
        %585 = vmatpush1.msra.mxu0 0.0
        %586 = vmatprep.subr.mxu0 0.0
        %587 = vmatpush1.msra.mxu0 0.0
        %588 = vmatprep.subr.mxu0 0.0
        %589 = vmatpush1.msra.mxu0 0.0
        %590 = vmatprep.subr.mxu0 0.0
        %591 = vmatpush1.msra.mxu0 0.0
        %592 = vmatprep.subr.mxu0 0.0
        %593 = vmatpush1.msra.mxu0 0.0
        %594 = vmatprep.subr.mxu0 0.0
        %595 = vmatpush1.msra.mxu0 0.0
        %596 = vmatprep.subr.mxu0 0.0
        %597 = vmatpush1.msra.mxu0 0.0
        %598 = vmatprep.subr.mxu0 0.0
        %599 = vmatpush1.msra.mxu0 0.0
        %600 = vmatprep.mubr.f32.mxu0 0.0
        %601 = vmatmul.mubr.f32.gmra.mrb[0].mxu0 %v534
        %v602 = vpop.f32.mrb[0].mxu0
        %v603 = vadd.f32 %v531, %v602
        %v604 = vpop.f32.mrb[0].mxu0
        %605 = vdwg.mxu0
        %606 = vst.msk [vmem:[%s268] sm:$0xff] %vm281, %v603
        %s607 = sand.u32 %s141, 1
        %s608 = scalar_lea.sflag [#allocation4], %s607
        %s609 = sand.u32 %s141, 1
        %s610 = smul.addr %s609, 8
        %s611 = scalar_lea.vmem [#allocation8], %s610
        // Predicated region
        $region53: #{tpu_custom_call.1} parent=39 // pred_check
          %p612 = pneg %p151
        $region54: #{tpu_custom_call.1} parent=39 // pred_check_branch
          %614 = sbr.rel (%p612) target = $region56
        $region55: #{tpu_custom_call.1} parent=39 // pred_region
          %s616 = ssub.s32 128, 128
          %617 = vsyncadd %s608, %s616
          %s618 = smul.addr %s23, 128
          %s619 = scalar_lea.hbm %s5, %s618
          %s621 = sshll.u32 %s611, 4
          %s622 = int_to_ptr.vmem [resolvable:$true] %s621
          %624 = dma.vmem_to_hbm [thread:$0]  %s622, 128, %s619, %s608
        $region56: #{tpu_custom_call.1} parent=39 // pred_fallthru
          _
      $region40: #{tpu_custom_call.1} parent=5 // pred_fallthru
        _
      %p625 = scmp.le.s32.totalorder 2, %s18
      // Predicated region
      $region57: #{tpu_custom_call.1} parent=5 // pred_check
        %p626 = pneg %p625
      $region58: #{tpu_custom_call.1} parent=5 // pred_check_branch
        %628 = sbr.rel (%p626) target = $region60
      $region59: #{tpu_custom_call.1} parent=5 // pred_region
        %s629 = ssub.s32 %s18, 2
        // Predicated region
        $region61: #{tpu_custom_call.1} parent=59 // pred_check
          %p630 = pneg %p157
        $region62: #{tpu_custom_call.1} parent=59 // pred_check_branch
          %632 = sbr.rel (%p630) target = $region64
        $region63: #{tpu_custom_call.1} parent=59 // pred_region
          %s633 = sand.u32 %s142, 1
          %s634 = scalar_lea.sflag [#allocation4], %s633
          %s635 = sand.u32 %s142, 1
          %s636 = smul.addr %s635, 8
          %s637 = scalar_lea.vmem [#allocation8], %s636
          %638 = dma.done %s634, 128
        $region64: #{tpu_custom_call.1} parent=59 // pred_fallthru
          _
      $region60: #{tpu_custom_call.1} parent=5 // pred_fallthru
        _
    $region6: #{tpu_custom_call.1} parent=1 // loop_footer
      %s22 = sadd.s32 1, %s18
    $region7: #{tpu_custom_call.1} parent=1 // loop_footer_branch
      %17 = sbr.rel target = $region3
    $region8: #{tpu_custom_call.1} parent=1 // loop_exit
      _
    %639 = vsyncpa [#allocation3], 1
    %s640 = scalar_lea.sflag [#allocation3], 1
    %641 = vsyncpa %s640, 1
    %642 = vsyncpa [#allocation6], 1
    %643 = vsyncpa [#allocation4], 1
    %s644 = scalar_lea.sflag [#allocation4], 1
    %645 = vsyncpa %s644, 1

</llo_original>
